<compile_context>
chip_gen: v6e
topology: v6e:2x2x1
jax: 0.10.0
libtpu: 0.0.40
codegen_flags: <defaults>
</compile_context>

<pallas_src>
import functools

import jax
import jax.numpy as jnp
from jax.experimental import pallas as pl
from jax.experimental.pallas import tpu as pltpu  # noqa: F401  (TPU backend; defaults suffice at these sizes)


# ----------------------------- config (small, synthetic) -----------------------------
BATCH = 2
NUM_CHANNELS = 4          # backbone.num_channels
HIDDEN = 32               # transformer.d_model
FEAT_H, FEAT_W = 8, 8     # spatial size of backbone feature map
NUM_QUERIES = 8
NUM_OBJ_CLASSES = 10
NUM_ATTN_CLASSES = 3
NUM_SPATIAL_CLASSES = 6
NUM_CONTACTING_CLASSES = 17
DEC_LAYERS_HOPD = 3
DEC_LAYERS_INTERACTION = 3
AUX_LOSS = True

LANE = 128                                # lane-dense output width
N_OBJ = NUM_OBJ_CLASSES + 1               # 11
N_ATTN = NUM_ATTN_CLASSES + 1             # 4
N_SPA = NUM_SPATIAL_CLASSES               # 6
N_CON = NUM_CONTACTING_CLASSES            # 17


# ----------------------------- fused Pallas kernel (grid-free, single block) -----------------------------
def _cdndsgg_fused_kernel(xs_ref, wproj_ref, bproj_ref,
                          xh_ref, wobj_ref, bobj_ref,
                          w1_ref, b1_ref, w2_ref, b2_ref, w3_ref, b3_ref,
                          xi_ref, wcat_ref, bcat_ref,
                          proj_ref, logits_ref, boxes_ref, inter_ref):
    """Whole CDNDSGG head stack in one kernel.

    xs_ref    : [B*Hs*Ws, C]  bf16 NHWC rows of the backbone feature map
    wproj_ref : [C, 128]      bf16 1x1-conv weight (cols 0:HIDDEN valid)
    xh_ref    : [M, H]        bf16 hopd decoder activations  (M = L*B*Q)
    wobj_ref  : [H, 128]      bf16 obj-class weight, cols [0:N_OBJ] valid
    w1_ref    : [H, 2H]       bf16 concat(sub_W1, obj_W1)
    w2_ref    : [2H, 2H]      bf16 block-diag(sub_W2, obj_W2)
    w3_ref    : [2H, 128]     bf16, cols [0:4]=sub_W3, [4:8]=obj_W3
    xi_ref    : [M, H]        bf16 interaction decoder activations
    wcat_ref  : [H, 128]      bf16 concat(attn, spatial, contacting) class heads
    biases    : f32 row vectors (epilogue kept in f32)
    Outputs are 128-lane-dense f32 slabs, sliced by the caller.
    """
    # ---- input_proj: 1x1 conv as matmul ----
    proj_ref[...] = (jnp.dot(xs_ref[...], wproj_ref[...],
                             preferred_element_type=jnp.float32) + bproj_ref[...])

    # ---- hopd: object-class linear head ----
    xh = xh_ref[...]
    logits_ref[...] = (jnp.dot(xh, wobj_ref[...],
                               preferred_element_type=jnp.float32) + bobj_ref[...])

    # ---- hopd: fused sub+obj 3-layer bbox MLPs (ReLU, ReLU, sigmoid) ----
    # f32 accumulate + f32 epilogue, bf16 only on the MXU operands.
    h = jnp.dot(xh, w1_ref[...], preferred_element_type=jnp.float32) + b1_ref[...]
    h = jnp.maximum(h, 0.0)
    h = jnp.dot(h.astype(jnp.bfloat16), w2_ref[...],
                preferred_element_type=jnp.float32) + b2_ref[...]
    h = jnp.maximum(h, 0.0)
    y = jnp.dot(h.astype(jnp.bfloat16), w3_ref[...],
                preferred_element_type=jnp.float32) + b3_ref[...]
    boxes_ref[...] = jax.nn.sigmoid(y)

    # ---- interaction: attn / spatial / contacting heads as one lane-dense matmul ----
    inter_ref[...] = (jnp.dot(xi_ref[...], wcat_ref[...],
                              preferred_element_type=jnp.float32) + bcat_ref[...])


# ----------------------------- parameter init (deterministic, PyTorch layout) -----------------------------
def init_linear(key, out_dim, in_dim):
    kw, kb = jax.random.split(key)
    bound = 1.0 / jnp.sqrt(in_dim)
    w = jax.random.uniform(kw, (out_dim, in_dim), jnp.float32, -bound, bound)
    b = jax.random.uniform(kb, (out_dim,), jnp.float32, -bound, bound)
    return w, b


def init_params(key):
    keys = jax.random.split(key, 16)
    params = {}
    params["query_embed"] = jax.random.normal(keys[0], (NUM_QUERIES, HIDDEN), jnp.float32)
    params["obj_class_embed"] = init_linear(keys[1], N_OBJ, HIDDEN)
    params["attn_class_embed"] = init_linear(keys[2], N_ATTN, HIDDEN)
    params["spatial_class_embed"] = init_linear(keys[3], N_SPA, HIDDEN)
    params["contacting_class_embed"] = init_linear(keys[4], N_CON, HIDDEN)
    params["sub_bbox_embed"] = (
        init_linear(keys[5], HIDDEN, HIDDEN),
        init_linear(keys[6], HIDDEN, HIDDEN),
        init_linear(keys[7], 4, HIDDEN),
    )
    params["obj_bbox_embed"] = (
        init_linear(keys[8], HIDDEN, HIDDEN),
        init_linear(keys[9], HIDDEN, HIDDEN),
        init_linear(keys[10], 4, HIDDEN),
    )
    # Conv2d(num_channels, hidden, kernel_size=1): weight [hidden, C, 1, 1]
    cw, cb = init_linear(keys[11], HIDDEN, NUM_CHANNELS)
    params["input_proj"] = (cw.reshape(HIDDEN, NUM_CHANNELS, 1, 1), cb)
    return params


def pack_params(raw):
    """One-time offline packing: transpose, fuse, lane-pad and bf16-cast the weights."""
    def T(w):
        return jnp.asarray(w, jnp.float32).T

    # --- hopd obj-class head ---
    wobj, bobj = raw["obj_class_embed"]
    wobj_p = jnp.zeros((HIDDEN, LANE), jnp.float32).at[:, :N_OBJ].set(T(wobj))
    bobj_p = jnp.zeros((1, LANE), jnp.float32).at[0, :N_OBJ].set(bobj)

    # --- fused sub/obj bbox MLPs ---
    (sw1, sb1), (sw2, sb2), (sw3, sb3) = raw["sub_bbox_embed"]
    (ow1, ob1), (ow2, ob2), (ow3, ob3) = raw["obj_bbox_embed"]
    w1 = jnp.concatenate([T(sw1), T(ow1)], axis=1)                       # [H, 2H]
    b1 = jnp.concatenate([sb1, ob1]).reshape(1, 2 * HIDDEN)
    w2 = jnp.zeros((2 * HIDDEN, 2 * HIDDEN), jnp.float32)
    w2 = w2.at[:HIDDEN, :HIDDEN].set(T(sw2)).at[HIDDEN:, HIDDEN:].set(T(ow2))  # block-diag
    b2 = jnp.concatenate([sb2, ob2]).reshape(1, 2 * HIDDEN)
    w3 = jnp.zeros((2 * HIDDEN, LANE), jnp.float32)
    w3 = w3.at[:HIDDEN, 0:4].set(T(sw3)).at[HIDDEN:, 4:8].set(T(ow3))
    b3 = jnp.zeros((1, LANE), jnp.float32).at[0, 0:4].set(sb3).at[0, 4:8].set(ob3)

    # --- interaction heads (concatenated along N, padded to 128 lanes) ---
    wa, ba = raw["attn_class_embed"]
    ws, bs = raw["spatial_class_embed"]
    wc, bc = raw["contacting_class_embed"]
    wcat = jnp.zeros((HIDDEN, LANE), jnp.float32)
    wcat = (wcat.at[:, 0:N_ATTN].set(T(wa))
                 .at[:, N_ATTN:N_ATTN + N_SPA].set(T(ws))
                 .at[:, N_ATTN + N_SPA:N_ATTN + N_SPA + N_CON].set(T(wc)))
    bcat = jnp.zeros((1, LANE), jnp.float32)
    bcat = (bcat.at[0, 0:N_ATTN].set(ba)
                 .at[0, N_ATTN:N_ATTN + N_SPA].set(bs)
                 .at[0, N_ATTN + N_SPA:N_ATTN + N_SPA + N_CON].set(bc))

    # --- input_proj 1x1 conv (lane-padded to 128 output cols) ---
    cw, cb = raw["input_proj"]
    wproj = jnp.zeros((NUM_CHANNELS, LANE), jnp.float32).at[:, :HIDDEN].set(
        jnp.asarray(cw, jnp.float32).reshape(HIDDEN, NUM_CHANNELS).T)
    bproj = jnp.zeros((1, LANE), jnp.float32).at[0, :HIDDEN].set(jnp.asarray(cb, jnp.float32))

    bf = lambda a: a.astype(jnp.bfloat16)   # MXU operands in bf16; biases stay f32
    return {
        "hopd": {"wobj": bf(wobj_p), "bobj": bobj_p,
                 "w1": bf(w1), "b1": b1, "w2": bf(w2), "b2": b2, "w3": bf(w3), "b3": b3},
        "inter": {"w": bf(wcat), "b": bcat},
        "proj": {"w": bf(wproj), "b": bproj},
        "query_embed": raw["query_embed"],
    }


# ----------------------------- CDNDSGG forward (jitted) -----------------------------
@functools.partial(jax.jit, static_argnames=("aux_loss",))
def cdndsgg_forward(packed, src_nchw, hopd_out, interaction_decoder_out,
                    ins_attn_weight, rel_attn_weight, aux_loss=AUX_LOSS):
    B, C, H, W = src_nchw.shape

    # NHWC rows for the 1x1 conv
    xs = jnp.transpose(src_nchw, (0, 2, 3, 1)).reshape(B * H * W, C).astype(jnp.bfloat16)

    Lh, Bh, Qh, Dh = hopd_out.shape
    xh = hopd_out.reshape(Lh * Bh * Qh, Dh).astype(jnp.bfloat16)
    Li, Bi, Qi, Di = interaction_decoder_out.shape
    xi = interaction_decoder_out.reshape(Li * Bi * Qi, Di).astype(jnp.bfloat16)

    ph, pi, pp = packed["hopd"], packed["inter"], packed["proj"]

    proj_slab, logits_slab, boxes_slab, inter_slab = pl.pallas_call(
        _cdndsgg_fused_kernel,
        out_shape=(jax.ShapeDtypeStruct((B * H * W, LANE), jnp.float32),
                   jax.ShapeDtypeStruct((Lh * Bh * Qh, LANE), jnp.float32),
                   jax.ShapeDtypeStruct((Lh * Bh * Qh, LANE), jnp.float32),
                   jax.ShapeDtypeStruct((Li * Bi * Qi, LANE), jnp.float32)),
    )(xs, pp["w"], pp["b"],
      xh, ph["wobj"], ph["bobj"],
      ph["w1"], ph["b1"], ph["w2"], ph["b2"], ph["w3"], ph["b3"],
      xi, pi["w"], pi["b"])

    # ---- input_proj output (NCHW) ----
    projected_src = jnp.transpose(
        proj_slab[:, :HIDDEN].reshape(B, H, W, HIDDEN), (0, 3, 1, 2))
    # TODO(synk): projected_src + query_embed feed the external transformer (not reimplemented);
    # it is returned from this function so the input_proj matmul is live under jit.

    # ---- hopd heads ----
    logits_slab = logits_slab.reshape(Lh, Bh, Qh, LANE)
    boxes_slab = boxes_slab.reshape(Lh, Bh, Qh, LANE)
    outputs_obj_class = logits_slab[..., :N_OBJ]
    outputs_sub_coord = boxes_slab[..., 0:4]
    outputs_obj_coord = boxes_slab[..., 4:8]

    # ---- interaction heads ----
    inter_slab = inter_slab.reshape(Li, Bi, Qi, LANE)
    outputs_attn_class = inter_slab[..., 0:N_ATTN]
    outputs_spatial_class = inter_slab[..., N_ATTN:N_ATTN + N_SPA]
    outputs_contacting_class = inter_slab[..., N_ATTN + N_SPA:N_ATTN + N_SPA + N_CON]

    out = {
        "pred_obj_logits": outputs_obj_class[-1],
        "pred_sub_boxes": outputs_sub_coord[-1],
        "pred_obj_boxes": outputs_obj_coord[-1],
        "pred_attn_logits": outputs_attn_class[-1],
        "pred_spatial_logits": outputs_spatial_class[-1],
        "pred_contacting_logits": outputs_contacting_class[-1],
        "ins_attn_weight": ins_attn_weight,
        "rel_attn_weight": rel_attn_weight,
    }
    if aux_loss:
        m = min(DEC_LAYERS_HOPD, DEC_LAYERS_INTERACTION)
        out["aux_outputs"] = [
            {
                "pred_obj_logits": outputs_obj_class[i],
                "pred_sub_boxes": outputs_sub_coord[i],
                "pred_obj_boxes": outputs_obj_coord[i],
                "pred_attn_logits": outputs_attn_class[i],
                "pred_spatial_logits": outputs_spatial_class[i],
                "pred_contacting_logits": outputs_contacting_class[i],
            }
            for i in range(-m, -1)
        ]
    return out, projected_src


if __name__ == "__main__":
    key = jax.random.PRNGKey(0)
    k_params, k_src, k_hopd, k_inter, k_ia, k_ra = jax.random.split(key, 6)

    raw_params = init_params(k_params)
    packed = pack_params(raw_params)

    # Backbone feature map (NCHW) — stands in for features[-1].decompose()[0].
    src = jax.random.normal(k_src, (BATCH, NUM_CHANNELS, FEAT_H, FEAT_W), jnp.float32)
    # Decoder stacks [num_layers, batch, num_queries, hidden] — stand in for transformer outputs.
    hopd_out = jax.random.normal(k_hopd, (DEC_LAYERS_HOPD, BATCH, NUM_QUERIES, HIDDEN), jnp.float32)
    interaction_decoder_out = jax.random.normal(
        k_inter, (DEC_LAYERS_INTERACTION, BATCH, NUM_QUERIES, HIDDEN), jnp.float32)
    ins_attn_weight = jax.random.uniform(k_ia, (BATCH, NUM_QUERIES, FEAT_H * FEAT_W), jnp.float32)
    rel_attn_weight = jax.random.uniform(k_ra, (BATCH, NUM_QUERIES, FEAT_H * FEAT_W), jnp.float32)

    out, projected_src = cdndsgg_forward(
        packed, src, hopd_out, interaction_decoder_out, ins_attn_weight, rel_attn_weight)
    (out, projected_src) = jax.block_until_ready((out, projected_src))

    # basic shape / range sanity
    assert projected_src.shape == (BATCH, HIDDEN, FEAT_H, FEAT_W)
    assert out["pred_obj_logits"].shape == (BATCH, NUM_QUERIES, NUM_OBJ_CLASSES + 1)
    assert out["pred_sub_boxes"].shape == (BATCH, NUM_QUERIES, 4)
    assert out["pred_obj_boxes"].shape == (BATCH, NUM_QUERIES, 4)
    assert out["pred_attn_logits"].shape == (BATCH, NUM_QUERIES, NUM_ATTN_CLASSES + 1)
    assert out["pred_spatial_logits"].shape == (BATCH, NUM_QUERIES, NUM_SPATIAL_CLASSES)
    assert out["pred_contacting_logits"].shape == (BATCH, NUM_QUERIES, NUM_CONTACTING_CLASSES)
    assert len(out["aux_outputs"]) == min(DEC_LAYERS_HOPD, DEC_LAYERS_INTERACTION) - 1
    assert bool(jnp.all((out["pred_sub_boxes"] >= 0) & (out["pred_sub_boxes"] <= 1)))
    assert bool(jnp.all((out["pred_obj_boxes"] >= 0) & (out["pred_obj_boxes"] <= 1)))
    assert bool(jnp.all(jnp.isfinite(out["pred_obj_logits"])))

    print("KERNEL_OK")
</pallas_src>

<mosaic_0001>
module attributes {stable_mosaic.version = 11 : i64} {
  func.func @_cdndsgg_fused_kernel(%arg0: memref<128x4xbf16, #tpu.memory_space<vmem>>, %arg1: memref<4x128xbf16, #tpu.memory_space<vmem>>, %arg2: memref<1x128xf32, #tpu.memory_space<vmem>>, %arg3: memref<48x32xbf16, #tpu.memory_space<vmem>>, %arg4: memref<32x128xbf16, #tpu.memory_space<vmem>>, %arg5: memref<1x128xf32, #tpu.memory_space<vmem>>, %arg6: memref<32x64xbf16, #tpu.memory_space<vmem>>, %arg7: memref<1x64xf32, #tpu.memory_space<vmem>>, %arg8: memref<64x64xbf16, #tpu.memory_space<vmem>>, %arg9: memref<1x64xf32, #tpu.memory_space<vmem>>, %arg10: memref<64x128xbf16, #tpu.memory_space<vmem>>, %arg11: memref<1x128xf32, #tpu.memory_space<vmem>>, %arg12: memref<48x32xbf16, #tpu.memory_space<vmem>>, %arg13: memref<32x128xbf16, #tpu.memory_space<vmem>>, %arg14: memref<1x128xf32, #tpu.memory_space<vmem>>, %arg15: memref<128x128xf32, #tpu.memory_space<vmem>>, %arg16: memref<48x128xf32, #tpu.memory_space<vmem>>, %arg17: memref<48x128xf32, #tpu.memory_space<vmem>>, %arg18: memref<48x128xf32, #tpu.memory_space<vmem>>) attributes {dimension_semantics = [], scalar_prefetch = 0 : i64, scratch_operands = 0 : i64, tpu.core_type = #tpu.core_type<tc>} {
    %c0 = arith.constant 0 : index
    %c0_0 = arith.constant 0 : index
    %0 = vector.load %arg0[%c0, %c0_0] : memref<128x4xbf16, #tpu.memory_space<vmem>>, vector<128x4xbf16>
    %c0_1 = arith.constant 0 : index
    %c0_2 = arith.constant 0 : index
    %1 = vector.load %arg1[%c0_1, %c0_2] : memref<4x128xbf16, #tpu.memory_space<vmem>>, vector<4x128xbf16>
    %cst = arith.constant dense<0.000000e+00> : vector<128x128xf32>
    %2 = tpu.matmul %0, %1, %cst {dimension_numbers = #tpu.dot_dimension_numbers<[1], [0], [0], [1], [0, 0, 1, 1], [], []>} : vector<128x4xbf16>, vector<4x128xbf16>, vector<128x128xf32> -> vector<128x128xf32>
    %c0_3 = arith.constant 0 : index
    %c0_4 = arith.constant 0 : index
    %3 = vector.load %arg2[%c0_3, %c0_4] : memref<1x128xf32, #tpu.memory_space<vmem>>, vector<1x128xf32>
    %4 = vector.broadcast %3 : vector<1x128xf32> to vector<128x128xf32>
    %5 = arith.addf %2, %4 : vector<128x128xf32>
    %c0_5 = arith.constant 0 : index
    %c0_6 = arith.constant 0 : index
    %6 = vector.load %arg15[%c0_5, %c0_6] : memref<128x128xf32, #tpu.memory_space<vmem>>, vector<128x128xf32>
    tpu.vector_store %arg15[%c0_5, %c0_6], %5 {strides = array<i32>} : memref<128x128xf32, #tpu.memory_space<vmem>>, vector<128x128xf32>,
    %c0_7 = arith.constant 0 : index
    %c0_8 = arith.constant 0 : index
    %7 = vector.load %arg3[%c0_7, %c0_8] : memref<48x32xbf16, #tpu.memory_space<vmem>>, vector<48x32xbf16>
    %c0_9 = arith.constant 0 : index
    %c0_10 = arith.constant 0 : index
    %8 = vector.load %arg4[%c0_9, %c0_10] : memref<32x128xbf16, #tpu.memory_space<vmem>>, vector<32x128xbf16>
    %cst_11 = arith.constant dense<0.000000e+00> : vector<48x128xf32>
    %9 = tpu.matmul %7, %8, %cst_11 {dimension_numbers = #tpu.dot_dimension_numbers<[1], [0], [0], [1], [0, 0, 1, 1], [], []>} : vector<48x32xbf16>, vector<32x128xbf16>, vector<48x128xf32> -> vector<48x128xf32>
    %c0_12 = arith.constant 0 : index
    %c0_13 = arith.constant 0 : index
    %10 = vector.load %arg5[%c0_12, %c0_13] : memref<1x128xf32, #tpu.memory_space<vmem>>, vector<1x128xf32>
    %11 = vector.broadcast %10 : vector<1x128xf32> to vector<48x128xf32>
    %12 = arith.addf %9, %11 : vector<48x128xf32>
    %c0_14 = arith.constant 0 : index
    %c0_15 = arith.constant 0 : index
    %13 = vector.load %arg16[%c0_14, %c0_15] : memref<48x128xf32, #tpu.memory_space<vmem>>, vector<48x128xf32>
    tpu.vector_store %arg16[%c0_14, %c0_15], %12 {strides = array<i32>} : memref<48x128xf32, #tpu.memory_space<vmem>>, vector<48x128xf32>,
    %c0_16 = arith.constant 0 : index
    %c0_17 = arith.constant 0 : index
    %14 = vector.load %arg6[%c0_16, %c0_17] : memref<32x64xbf16, #tpu.memory_space<vmem>>, vector<32x64xbf16>
    %cst_18 = arith.constant dense<0.000000e+00> : vector<48x64xf32>
    %15 = tpu.matmul %7, %14, %cst_18 {dimension_numbers = #tpu.dot_dimension_numbers<[1], [0], [0], [1], [0, 0, 1, 1], [], []>} : vector<48x32xbf16>, vector<32x64xbf16>, vector<48x64xf32> -> vector<48x64xf32>
    %c0_19 = arith.constant 0 : index
    %c0_20 = arith.constant 0 : index
    %16 = vector.load %arg7[%c0_19, %c0_20] : memref<1x64xf32, #tpu.memory_space<vmem>>, vector<1x64xf32>
    %17 = vector.broadcast %16 : vector<1x64xf32> to vector<48x64xf32>
    %18 = arith.addf %15, %17 : vector<48x64xf32>
    %cst_21 = arith.constant 0.000000e+00 : f32
    %19 = vector.broadcast %cst_21 : f32 to vector<48x64xf32>
    %20 = arith.maximumf %18, %19 : vector<48x64xf32>
    %21 = arith.truncf %20 : vector<48x64xf32> to vector<48x64xbf16>
    %c0_22 = arith.constant 0 : index
    %c0_23 = arith.constant 0 : index
    %22 = vector.load %arg8[%c0_22, %c0_23] : memref<64x64xbf16, #tpu.memory_space<vmem>>, vector<64x64xbf16>
    %cst_24 = arith.constant dense<0.000000e+00> : vector<48x64xf32>
    %23 = tpu.matmul %21, %22, %cst_24 {dimension_numbers = #tpu.dot_dimension_numbers<[1], [0], [0], [1], [0, 0, 1, 1], [], []>} : vector<48x64xbf16>, vector<64x64xbf16>, vector<48x64xf32> -> vector<48x64xf32>
    %c0_25 = arith.constant 0 : index
    %c0_26 = arith.constant 0 : index
    %24 = vector.load %arg9[%c0_25, %c0_26] : memref<1x64xf32, #tpu.memory_space<vmem>>, vector<1x64xf32>
    %25 = vector.broadcast %24 : vector<1x64xf32> to vector<48x64xf32>
    %26 = arith.addf %23, %25 : vector<48x64xf32>
    %cst_27 = arith.constant 0.000000e+00 : f32
    %27 = vector.broadcast %cst_27 : f32 to vector<48x64xf32>
    %28 = arith.maximumf %26, %27 : vector<48x64xf32>
    %29 = arith.truncf %28 : vector<48x64xf32> to vector<48x64xbf16>
    %c0_28 = arith.constant 0 : index
    %c0_29 = arith.constant 0 : index
    %30 = vector.load %arg10[%c0_28, %c0_29] : memref<64x128xbf16, #tpu.memory_space<vmem>>, vector<64x128xbf16>
    %cst_30 = arith.constant dense<0.000000e+00> : vector<48x128xf32>
    %31 = tpu.matmul %29, %30, %cst_30 {dimension_numbers = #tpu.dot_dimension_numbers<[1], [0], [0], [1], [0, 0, 1, 1], [], []>} : vector<48x64xbf16>, vector<64x128xbf16>, vector<48x128xf32> -> vector<48x128xf32>
    %c0_31 = arith.constant 0 : index
    %c0_32 = arith.constant 0 : index
    %32 = vector.load %arg11[%c0_31, %c0_32] : memref<1x128xf32, #tpu.memory_space<vmem>>, vector<1x128xf32>
    %33 = vector.broadcast %32 : vector<1x128xf32> to vector<48x128xf32>
    %34 = arith.addf %31, %33 : vector<48x128xf32>
    %35 = arith.negf %34 : vector<48x128xf32>
    %36 = math.exp %35 : vector<48x128xf32>
    %cst_33 = arith.constant 1.000000e+00 : f32
    %37 = vector.broadcast %cst_33 : f32 to vector<48x128xf32>
    %38 = arith.addf %37, %36 : vector<48x128xf32>
    %39 = arith.divf %37, %38 : vector<48x128xf32>
    %c0_34 = arith.constant 0 : index
    %c0_35 = arith.constant 0 : index
    %40 = vector.load %arg17[%c0_34, %c0_35] : memref<48x128xf32, #tpu.memory_space<vmem>>, vector<48x128xf32>
    tpu.vector_store %arg17[%c0_34, %c0_35], %39 {strides = array<i32>} : memref<48x128xf32, #tpu.memory_space<vmem>>, vector<48x128xf32>,
    %c0_36 = arith.constant 0 : index
    %c0_37 = arith.constant 0 : index
    %41 = vector.load %arg12[%c0_36, %c0_37] : memref<48x32xbf16, #tpu.memory_space<vmem>>, vector<48x32xbf16>
    %c0_38 = arith.constant 0 : index
    %c0_39 = arith.constant 0 : index
    %42 = vector.load %arg13[%c0_38, %c0_39] : memref<32x128xbf16, #tpu.memory_space<vmem>>, vector<32x128xbf16>
    %cst_40 = arith.constant dense<0.000000e+00> : vector<48x128xf32>
    %43 = tpu.matmul %41, %42, %cst_40 {dimension_numbers = #tpu.dot_dimension_numbers<[1], [0], [0], [1], [0, 0, 1, 1], [], []>} : vector<48x32xbf16>, vector<32x128xbf16>, vector<48x128xf32> -> vector<48x128xf32>
    %c0_41 = arith.constant 0 : index
    %c0_42 = arith.constant 0 : index
    %44 = vector.load %arg14[%c0_41, %c0_42] : memref<1x128xf32, #tpu.memory_space<vmem>>, vector<1x128xf32>
    %45 = vector.broadcast %44 : vector<1x128xf32> to vector<48x128xf32>
    %46 = arith.addf %43, %45 : vector<48x128xf32>
    %c0_43 = arith.constant 0 : index
    %c0_44 = arith.constant 0 : index
    %47 = vector.load %arg18[%c0_43, %c0_44] : memref<48x128xf32, #tpu.memory_space<vmem>>, vector<48x128xf32>
    tpu.vector_store %arg18[%c0_43, %c0_44], %46 {strides = array<i32>} : memref<48x128xf32, #tpu.memory_space<vmem>>, vector<48x128xf32>,
    return
  }
}

</mosaic_0001>

<llo_original>
// kernel: cdndsgg_forward.1
$region0: #{cdndsgg_forward.1}
  #allocation0 [shape = 'u32[]', space=smem, size = 0x4, offset = 0x4, fixed_abs, tag = 'smem constant byte address 0x4 - core index']
  #allocation1 [shape = 'u32[144,128]{1,0:T(1,128)}', space=vmem, size = 0x12000, scoped, tag = 'internal scratch']
  %s0 = inlined_call_operand.vmem [shape: bf16[128,4], index: 0, kind: input, shape index: {}]
  %s1 = inlined_call_operand.vmem [shape: bf16[4,128], index: 1, kind: input, shape index: {}]
  %s2 = inlined_call_operand.vmem [shape: f32[1,128], index: 2, kind: input, shape index: {}]
  %s3 = inlined_call_operand.vmem [shape: bf16[48,32], index: 3, kind: input, shape index: {}]
  %s4 = inlined_call_operand.vmem [shape: bf16[32,128], index: 4, kind: input, shape index: {}]
  %s5 = inlined_call_operand.vmem [shape: f32[1,128], index: 5, kind: input, shape index: {}]
  %s6 = inlined_call_operand.vmem [shape: bf16[32,64], index: 6, kind: input, shape index: {}]
  %s7 = inlined_call_operand.vmem [shape: f32[1,64], index: 7, kind: input, shape index: {}]
  %s8 = inlined_call_operand.vmem [shape: bf16[64,64], index: 8, kind: input, shape index: {}]
  %s9 = inlined_call_operand.vmem [shape: f32[1,64], index: 9, kind: input, shape index: {}]
  %s10 = inlined_call_operand.vmem [shape: bf16[64,128], index: 10, kind: input, shape index: {}]
  %s11 = inlined_call_operand.vmem [shape: f32[1,128], index: 11, kind: input, shape index: {}]
  %s12 = inlined_call_operand.vmem [shape: bf16[48,32], index: 12, kind: input, shape index: {}]
  %s13 = inlined_call_operand.vmem [shape: bf16[32,128], index: 13, kind: input, shape index: {}]
  %s14 = inlined_call_operand.vmem [shape: f32[1,128], index: 14, kind: input, shape index: {}]
  %s15 = inlined_call_operand.hbm [shape: f32[128,128], index: 15, kind: output, shape index: {0}]
  %s16 = inlined_call_operand.vmem [shape: f32[48,128], index: 16, kind: output, shape index: {1}]
  %s17 = inlined_call_operand.vmem [shape: f32[48,128], index: 17, kind: output, shape index: {2}]
  %s18 = inlined_call_operand.vmem [shape: f32[48,128], index: 18, kind: output, shape index: {3}]
  %19 = xla_tuple %s15, %s16, %s17, %s18
  %s20 = sld [smem:[#allocation0]]
  $region94: #{cdndsgg_forward.1} parent=0
    _
  %s22 = ssub.s32 1, %s20
  %s23 = scalar_select 0, %s22, %s20
  $region1: #{cdndsgg_forward.1} parent=0
    #allocation2 [shape = 'u8[65536]{0}', space=vmem, size = 0x10000, scoped, tag = 'output window, operand 0, single buffered']
    #allocation3 [shape = 's32[1]{0}', space=sflag, size = 0x4, scoped, tag = 'scoped memory for cdndsgg_forward.1']
    %24 = vsyncpa [#allocation3], 0
    // Predicated region
    $region2: #{cdndsgg_forward.1} parent=1 // pred_check
      _
    $region3: #{cdndsgg_forward.1} parent=1 // pred_check_branch
      %26 = sbr.rel (0) target = $region5
    $region4: #{cdndsgg_forward.1} parent=1 // pred_region
      _
    $region5: #{cdndsgg_forward.1} parent=1 // pred_fallthru
      _
    // Predicated region
    $region6: #{cdndsgg_forward.1} parent=1 // pred_check
      _
    $region7: #{cdndsgg_forward.1} parent=1 // pred_check_branch
      %28 = sbr.rel (0) target = $region9
    $region8: #{cdndsgg_forward.1} parent=1 // pred_region
      _
    $region9: #{cdndsgg_forward.1} parent=1 // pred_fallthru
      _
    // Predicated region
    $region10: #{cdndsgg_forward.1} parent=1 // pred_check
      _
    $region11: #{cdndsgg_forward.1} parent=1 // pred_check_branch
      %30 = sbr.rel (0) target = $region13
    $region12: #{cdndsgg_forward.1} parent=1 // pred_region
      _
    $region13: #{cdndsgg_forward.1} parent=1 // pred_fallthru
      _
    // Predicated region
    $region14: #{cdndsgg_forward.1} parent=1 // pred_check
      _
    $region15: #{cdndsgg_forward.1} parent=1 // pred_check_branch
      %32 = sbr.rel (0) target = $region17
    $region16: #{cdndsgg_forward.1} parent=1 // pred_region
      _
    $region17: #{cdndsgg_forward.1} parent=1 // pred_fallthru
      _
    // Predicated region
    $region18: #{cdndsgg_forward.1} parent=1 // pred_check
      _
    $region19: #{cdndsgg_forward.1} parent=1 // pred_check_branch
      %34 = sbr.rel (0) target = $region21
    $region20: #{cdndsgg_forward.1} parent=1 // pred_region
      _
    $region21: #{cdndsgg_forward.1} parent=1 // pred_fallthru
      _
    // Predicated region
    $region22: #{cdndsgg_forward.1} parent=1 // pred_check
      _
    $region23: #{cdndsgg_forward.1} parent=1 // pred_check_branch
      %36 = sbr.rel (0) target = $region25
    $region24: #{cdndsgg_forward.1} parent=1 // pred_region
      _
    $region25: #{cdndsgg_forward.1} parent=1 // pred_fallthru
      _
    // Predicated region
    $region26: #{cdndsgg_forward.1} parent=1 // pred_check
      _
    $region27: #{cdndsgg_forward.1} parent=1 // pred_check_branch
      %38 = sbr.rel (0) target = $region29
    $region28: #{cdndsgg_forward.1} parent=1 // pred_region
      _
    $region29: #{cdndsgg_forward.1} parent=1 // pred_fallthru
      _
    // Predicated region
    $region30: #{cdndsgg_forward.1} parent=1 // pred_check
      _
    $region31: #{cdndsgg_forward.1} parent=1 // pred_check_branch
      %40 = sbr.rel (0) target = $region33
    $region32: #{cdndsgg_forward.1} parent=1 // pred_region
      _
    $region33: #{cdndsgg_forward.1} parent=1 // pred_fallthru
      _
    // Predicated region
    $region34: #{cdndsgg_forward.1} parent=1 // pred_check
      _
    $region35: #{cdndsgg_forward.1} parent=1 // pred_check_branch
      %42 = sbr.rel (0) target = $region37
    $region36: #{cdndsgg_forward.1} parent=1 // pred_region
      _
    $region37: #{cdndsgg_forward.1} parent=1 // pred_fallthru
      _
    // Predicated region
    $region38: #{cdndsgg_forward.1} parent=1 // pred_check
      _
    $region39: #{cdndsgg_forward.1} parent=1 // pred_check_branch
      %44 = sbr.rel (0) target = $region41
    $region40: #{cdndsgg_forward.1} parent=1 // pred_region
      _
    $region41: #{cdndsgg_forward.1} parent=1 // pred_fallthru
      _
    // Predicated region
    $region42: #{cdndsgg_forward.1} parent=1 // pred_check
      _
    $region43: #{cdndsgg_forward.1} parent=1 // pred_check_branch
      %46 = sbr.rel (0) target = $region45
    $region44: #{cdndsgg_forward.1} parent=1 // pred_region
      _
    $region45: #{cdndsgg_forward.1} parent=1 // pred_fallthru
      _
    // Predicated region
    $region46: #{cdndsgg_forward.1} parent=1 // pred_check
      _
    $region47: #{cdndsgg_forward.1} parent=1 // pred_check_branch
      %48 = sbr.rel (0) target = $region49
    $region48: #{cdndsgg_forward.1} parent=1 // pred_region
      _
    $region49: #{cdndsgg_forward.1} parent=1 // pred_fallthru
      _
    // Predicated region
    $region50: #{cdndsgg_forward.1} parent=1 // pred_check
      _
    $region51: #{cdndsgg_forward.1} parent=1 // pred_check_branch
      %50 = sbr.rel (0) target = $region53
    $region52: #{cdndsgg_forward.1} parent=1 // pred_region
      _
    $region53: #{cdndsgg_forward.1} parent=1 // pred_fallthru
      _
    // Predicated region
    $region54: #{cdndsgg_forward.1} parent=1 // pred_check
      _
    $region55: #{cdndsgg_forward.1} parent=1 // pred_check_branch
      %52 = sbr.rel (0) target = $region57
    $region56: #{cdndsgg_forward.1} parent=1 // pred_region
      _
    $region57: #{cdndsgg_forward.1} parent=1 // pred_fallthru
      _
    // Predicated region
    $region58: #{cdndsgg_forward.1} parent=1 // pred_check
      _
    $region59: #{cdndsgg_forward.1} parent=1 // pred_check_branch
      %54 = sbr.rel (0) target = $region61
    $region60: #{cdndsgg_forward.1} parent=1 // pred_region
      _
    $region61: #{cdndsgg_forward.1} parent=1 // pred_fallthru
      _
    %v56 = vld [vmem:[%s0] sm:$0xf]
    %v57 = vld [vmem:[%s0 + $0x4] sm:$0xf]
    %v58 = vld [vmem:[%s0 + $0x8] sm:$0xf]
    %v59 = vld [vmem:[%s0 + $0xc] sm:$0xf]
    %v60 = vld [vmem:[%s0 + $0x10] sm:$0xf]
    %v61 = vld [vmem:[%s0 + $0x14] sm:$0xf]
    %v62 = vld [vmem:[%s0 + $0x18] sm:$0xf]
    %v63 = vld [vmem:[%s0 + $0x1c] sm:$0xf]
    %v64 = vld [vmem:[%s0 + $0x20] sm:$0xf]
    %v65 = vld [vmem:[%s0 + $0x24] sm:$0xf]
    %v66 = vld [vmem:[%s0 + $0x28] sm:$0xf]
    %v67 = vld [vmem:[%s0 + $0x2c] sm:$0xf]
    %v68 = vld [vmem:[%s0 + $0x30] sm:$0xf]
    %v69 = vld [vmem:[%s0 + $0x34] sm:$0xf]
    %v70 = vld [vmem:[%s0 + $0x38] sm:$0xf]
    %v71 = vld [vmem:[%s0 + $0x3c] sm:$0xf]
    %v72 = vld [vmem:[%s1] sm:$0x3]
    %v73 = vld [vmem:[%s2] sm:$0x1]
    %v75 = vlaneseq
    %v76 = vshrl.u32 %v75, 7
    %v77 = vsub.s32 0, %v76
    %v78 = vrot.slane %v73, %v77
    %v96 = vunpack.c.l.b16 %v56
    %v97 = vunpack.c.l.b16 %v57
    %v98 = vunpack.c.l.b16 %v58
    %v99 = vunpack.c.l.b16 %v59
    %v100 = vunpack.c.l.b16 %v60
    %v101 = vunpack.c.l.b16 %v61
    %v102 = vunpack.c.l.b16 %v62
    %v103 = vunpack.c.l.b16 %v63
    %v104 = vunpack.c.l.b16 %v64
    %v105 = vunpack.c.l.b16 %v65
    %v106 = vunpack.c.l.b16 %v66
    %v107 = vunpack.c.l.b16 %v67
    %v108 = vunpack.c.l.b16 %v68
    %v109 = vunpack.c.l.b16 %v69
    %v110 = vunpack.c.l.b16 %v70
    %v111 = vunpack.c.l.b16 %v71
    %v112 = vpack.c.b16 %v97, %v96
    %v113 = vpack.c.b16 %v99, %v98
    %v114 = vpack.c.b16 %v101, %v100
    %v115 = vpack.c.b16 %v103, %v102
    %v116 = vpack.c.b16 %v105, %v104
    %v117 = vpack.c.b16 %v107, %v106
    %v118 = vpack.c.b16 %v109, %v108
    %v119 = vpack.c.b16 %v111, %v110
    %vm120 = vcmask 31744
    %v122 = vsel %vm120, %v112, 0
    %v125 = vsel %vm120, %v113, 0
    %v128 = vsel %vm120, %v114, 0
    %v131 = vsel %vm120, %v115, 0
    %v134 = vsel %vm120, %v116, 0
    %v137 = vsel %vm120, %v117, 0
    %v140 = vsel %vm120, %v118, 0
    %v143 = vsel %vm120, %v119, 0
    %vm145 = vcmask 1041408
    %v147 = vsel %vm145, %v72, 0
    %149 = vmatprep.subr.bf16.mxu0 0
    %150 = vmatpush1.bf16.msra.mxu0 0
    %151 = vmatprep.subr.bf16.mxu0 0
    %152 = vmatpush1.bf16.msra.mxu0 0
    %153 = vmatprep.subr.bf16.mxu0 0
    %154 = vmatpush1.bf16.msra.mxu0 0
    %155 = vmatprep.subr.bf16.mxu0 0
    %156 = vmatpush1.bf16.msra.mxu0 0
    %157 = vmatprep.subr.bf16.mxu0 0
    %158 = vmatpush1.bf16.msra.mxu0 0
    %159 = vmatprep.subr.bf16.mxu0 0
    %160 = vmatpush1.bf16.msra.mxu0 0
    %161 = vmatprep.subr.bf16.mxu0 0
    %162 = vmatpush1.bf16.msra.mxu0 0
    %163 = vmatprep.subr.bf16.mxu0 0
    %164 = vmatpush1.bf16.msra.mxu0 %v147
    %165 = vmatprep.subr.bf16.mxu0 0
    %166 = vmatpush2.bf16.msra.mxu0 0
    %167 = vmatprep.subr.bf16.mxu0 0
    %168 = vmatpush2.bf16.msra.mxu0 0
    %169 = vmatprep.subr.bf16.mxu0 0
    %170 = vmatpush2.bf16.msra.mxu0 0
    %171 = vmatprep.subr.bf16.mxu0 0
    %172 = vmatpush2.bf16.msra.mxu0 0
    %173 = vmatprep.subr.bf16.mxu0 0
    %174 = vmatpush2.bf16.msra.mxu0 0
    %175 = vmatprep.subr.bf16.mxu0 0
    %176 = vmatpush2.bf16.msra.mxu0 0
    %177 = vmatprep.subr.bf16.mxu0 0
    %178 = vmatpush2.bf16.msra.mxu0 0
    %179 = vmatprep.subr.bf16.mxu0 0
    %180 = vmatpush2.bf16.msra.mxu0 0
    %181 = vmatprep.mubr.bf16.mxu0 0
    %182 = vmatmul.mubr.bf16.gmra.mxu0 %v122
    %v183 = vpop.f32.mrf.mxu0
    %v184 = vadd.f32 %v78, %v183
    %v185 = vpop.f32.mrf.mxu0
    %v186 = vpop.f32.mrf.mxu0
    %v187 = vadd.f32 %v78, %v186
    %v188 = vpop.f32.mrf.mxu0
    %189 = vmatprep.mubr.bf16.mxu0 0
    %190 = vmatmul.mubr.bf16.gmra.mxu0 %v125
    %v191 = vpop.f32.mrf.mxu0
    %v192 = vadd.f32 %v78, %v191
    %v193 = vpop.f32.mrf.mxu0
    %v194 = vpop.f32.mrf.mxu0
    %v195 = vadd.f32 %v78, %v194
    %v196 = vpop.f32.mrf.mxu0
    %197 = vmatprep.mubr.bf16.mxu0 0
    %198 = vmatmul.mubr.bf16.gmra.mxu0 %v128
    %v199 = vpop.f32.mrf.mxu0
    %v200 = vadd.f32 %v78, %v199
    %v201 = vpop.f32.mrf.mxu0
    %v202 = vpop.f32.mrf.mxu0
    %v203 = vadd.f32 %v78, %v202
    %v204 = vpop.f32.mrf.mxu0
    %205 = vmatprep.mubr.bf16.mxu0 0
    %206 = vmatmul.mubr.bf16.gmra.mxu0 %v131
    %v207 = vpop.f32.mrf.mxu0
    %v208 = vadd.f32 %v78, %v207
    %v209 = vpop.f32.mrf.mxu0
    %v210 = vpop.f32.mrf.mxu0
    %v211 = vadd.f32 %v78, %v210
    %v212 = vpop.f32.mrf.mxu0
    %213 = vmatprep.mubr.bf16.mxu0 0
    %214 = vmatmul.mubr.bf16.gmra.mxu0 %v134
    %v215 = vpop.f32.mrf.mxu0
    %v216 = vadd.f32 %v78, %v215
    %v217 = vpop.f32.mrf.mxu0
    %v218 = vpop.f32.mrf.mxu0
    %v219 = vadd.f32 %v78, %v218
    %v220 = vpop.f32.mrf.mxu0
    %221 = vmatprep.mubr.bf16.mxu0 0
    %222 = vmatmul.mubr.bf16.gmra.mxu0 %v137
    %v223 = vpop.f32.mrf.mxu0
    %v224 = vadd.f32 %v78, %v223
    %v225 = vpop.f32.mrf.mxu0
    %v226 = vpop.f32.mrf.mxu0
    %v227 = vadd.f32 %v78, %v226
    %v228 = vpop.f32.mrf.mxu0
    %229 = vmatprep.mubr.bf16.mxu0 0
    %230 = vmatmul.mubr.bf16.gmra.mxu0 %v140
    %v231 = vpop.f32.mrf.mxu0
    %v232 = vadd.f32 %v78, %v231
    %v233 = vpop.f32.mrf.mxu0
    %v234 = vpop.f32.mrf.mxu0
    %v235 = vadd.f32 %v78, %v234
    %v236 = vpop.f32.mrf.mxu0
    %237 = vmatprep.mubr.bf16.mxu0 0
    %238 = vmatmul.mubr.bf16.gmra.mxu0 %v143
    %v239 = vpop.f32.mrf.mxu0
    %v240 = vadd.f32 %v78, %v239
    %v241 = vpop.f32.mrf.mxu0
    %v242 = vpop.f32.mrf.mxu0
    %v243 = vadd.f32 %v78, %v242
    %v244 = vpop.f32.mrf.mxu0
    %245 = vdwg.mxu0
    %246 = vst [vmem:[#allocation2] sm:$0xff] %v184
    %247 = vst [vmem:[#allocation2 + $0x8] sm:$0xff] %v187
    %248 = vst [vmem:[#allocation2 + $0x10] sm:$0xff] %v192
    %249 = vst [vmem:[#allocation2 + $0x18] sm:$0xff] %v195
    %250 = vst [vmem:[#allocation2 + $0x20] sm:$0xff] %v200
    %251 = vst [vmem:[#allocation2 + $0x28] sm:$0xff] %v203
    %252 = vst [vmem:[#allocation2 + $0x30] sm:$0xff] %v208
    %253 = vst [vmem:[#allocation2 + $0x38] sm:$0xff] %v211
    %254 = vst [vmem:[#allocation2 + $0x40] sm:$0xff] %v216
    %255 = vst [vmem:[#allocation2 + $0x48] sm:$0xff] %v219
    %256 = vst [vmem:[#allocation2 + $0x50] sm:$0xff] %v224
    %257 = vst [vmem:[#allocation2 + $0x58] sm:$0xff] %v227
    %258 = vst [vmem:[#allocation2 + $0x60] sm:$0xff] %v232
    %259 = vst [vmem:[#allocation2 + $0x68] sm:$0xff] %v235
    %260 = vst [vmem:[#allocation2 + $0x70] sm:$0xff] %v240
    %261 = vst [vmem:[#allocation2 + $0x78] sm:$0xff] %v243
    %v262 = vld [vmem:[%s3] sm:$0xf]
    %v263 = vld [vmem:[%s3 + $0x4] sm:$0xf]
    %v264 = vld [vmem:[%s3 + $0x8] sm:$0xf]
    %v265 = vld [vmem:[%s3 + $0xc] sm:$0xf]
    %v266 = vld [vmem:[%s3 + $0x10] sm:$0xf]
    %v267 = vld [vmem:[%s3 + $0x14] sm:$0xf]
    %v268 = vld [vmem:[%s4] sm:$0xf]
    %v269 = vld [vmem:[%s4 + $0x4] sm:$0xf]
    %v270 = vld [vmem:[%s4 + $0x8] sm:$0xf]
    %v271 = vld [vmem:[%s4 + $0xc] sm:$0xf]
    %v272 = vld [vmem:[%s5] sm:$0x1]
    %v274 = vlaneseq
    %v275 = vshrl.u32 %v274, 7
    %v276 = vsub.s32 0, %v275
    %v277 = vrot.slane %v272, %v276
    %v285 = vunpack.c.l.b16 %v262
    %v286 = vunpack.c.l.b16 %v263
    %v287 = vunpack.c.l.b16 %v264
    %v288 = vunpack.c.l.b16 %v265
    %v289 = vunpack.c.l.b16 %v266
    %v290 = vunpack.c.l.b16 %v267
    %v291 = vpack.c.b16 %v286, %v285
    %v292 = vpack.c.b16 %v288, %v287
    %v293 = vpack.c.b16 %v290, %v289
    %v298 = vunpack.c.l.b16 %v268
    %v299 = vunpack.c.l.b16 %v269
    %v300 = vunpack.c.l.b16 %v270
    %v301 = vunpack.c.l.b16 %v271
    %v302 = vpack.c.b16 %v299, %v298
    %v303 = vpack.c.b16 %v301, %v300
    %vm306 = vcmask 261120
    %v308 = vsel %vm306, %v291, 0
    %v311 = vsel %vm306, %v292, 0
    %v314 = vsel %vm306, %v293, 0
    %316 = vmatprep.subr.bf16.mxu0 0
    %317 = vmatpush1.bf16.msra.mxu0 0
    %318 = vmatprep.subr.bf16.mxu0 0
    %319 = vmatpush1.bf16.msra.mxu0 0
    %320 = vmatprep.subr.bf16.mxu0 0
    %321 = vmatpush1.bf16.msra.mxu0 0
    %322 = vmatprep.subr.bf16.mxu0 0
    %323 = vmatpush1.bf16.msra.mxu0 0
    %324 = vmatprep.subr.bf16.mxu0 0
    %325 = vmatpush1.bf16.msra.mxu0 0
    %326 = vmatprep.subr.bf16.mxu0 0
    %327 = vmatpush1.bf16.msra.mxu0 0
    %328 = vmatprep.subr.bf16.mxu0 0
    %329 = vmatpush1.bf16.msra.mxu0 %v303
    %330 = vmatprep.subr.bf16.mxu0 0
    %331 = vmatpush1.bf16.msra.mxu0 %v302
    %332 = vmatprep.subr.bf16.mxu0 0
    %333 = vmatpush2.bf16.msra.mxu0 0
    %334 = vmatprep.subr.bf16.mxu0 0
    %335 = vmatpush2.bf16.msra.mxu0 0
    %336 = vmatprep.subr.bf16.mxu0 0
    %337 = vmatpush2.bf16.msra.mxu0 0
    %338 = vmatprep.subr.bf16.mxu0 0
    %339 = vmatpush2.bf16.msra.mxu0 0
    %340 = vmatprep.subr.bf16.mxu0 0
    %341 = vmatpush2.bf16.msra.mxu0 0
    %342 = vmatprep.subr.bf16.mxu0 0
    %343 = vmatpush2.bf16.msra.mxu0 0
    %344 = vmatprep.subr.bf16.mxu0 0
    %345 = vmatpush2.bf16.msra.mxu0 0
    %346 = vmatprep.subr.bf16.mxu0 0
    %347 = vmatpush2.bf16.msra.mxu0 0
    %348 = vmatprep.mubr.bf16.mxu0 0
    %349 = vmatmul.mubr.bf16.gmra.mxu0 %v308
    %v350 = vpop.f32.mrf.mxu0
    %v351 = vadd.f32 %v277, %v350
    %v352 = vpop.f32.mrf.mxu0
    %v353 = vpop.f32.mrf.mxu0
    %v354 = vadd.f32 %v277, %v353
    %v355 = vpop.f32.mrf.mxu0
    %356 = vmatprep.mubr.bf16.mxu0 0
    %357 = vmatmul.mubr.bf16.gmra.mxu0 %v311
    %v358 = vpop.f32.mrf.mxu0
    %v359 = vadd.f32 %v277, %v358
    %v360 = vpop.f32.mrf.mxu0
    %v361 = vpop.f32.mrf.mxu0
    %v362 = vadd.f32 %v277, %v361
    %v363 = vpop.f32.mrf.mxu0
    %364 = vmatprep.mubr.bf16.mxu0 0
    %365 = vmatmul.mubr.bf16.gmra.mxu0 %v314
    %v366 = vpop.f32.mrf.mxu0
    %v367 = vadd.f32 %v277, %v366
    %v368 = vpop.f32.mrf.mxu0
    %v369 = vpop.f32.mrf.mxu0
    %v370 = vadd.f32 %v277, %v369
    %v371 = vpop.f32.mrf.mxu0
    %372 = vdwg.mxu0
    %373 = vst [vmem:[%s16] sm:$0xff] %v351
    %374 = vst [vmem:[%s16 + $0x8] sm:$0xff] %v354
    %375 = vst [vmem:[%s16 + $0x10] sm:$0xff] %v359
    %376 = vst [vmem:[%s16 + $0x18] sm:$0xff] %v362
    %377 = vst [vmem:[%s16 + $0x20] sm:$0xff] %v367
    %378 = vst [vmem:[%s16 + $0x28] sm:$0xff] %v370
    %v379 = vld [vmem:[%s6] sm:$0xf]
    %v380 = vld [vmem:[%s6 + $0x4] sm:$0xf]
    %v381 = vld [vmem:[%s6 + $0x8] sm:$0xf]
    %v382 = vld [vmem:[%s6 + $0xc] sm:$0xf]
    %v383 = vld [vmem:[%s7] sm:$0x1]
    %v385 = vlaneseq
    %v386 = vshrl.u32 %v385, 7
    %v387 = vsub.s32 0, %v386
    %v388 = vrot.slane %v383, %v387
    %v394 = vunpack.c.l.b16 %v379
    %v395 = vunpack.c.l.b16 %v380
    %v396 = vunpack.c.l.b16 %v381
    %v397 = vunpack.c.l.b16 %v382
    %v398 = vpack.c.b16 %v395, %v394
    %v399 = vpack.c.b16 %v397, %v396
    %402 = vmatprep.subr.bf16.mxu0 0
    %403 = vmatpush1.bf16.msra.mxu0 0
    %404 = vmatprep.subr.bf16.mxu0 0
    %405 = vmatpush1.bf16.msra.mxu0 0
    %406 = vmatprep.subr.bf16.mxu0 0
    %407 = vmatpush1.bf16.msra.mxu0 0
    %408 = vmatprep.subr.bf16.mxu0 0
    %409 = vmatpush1.bf16.msra.mxu0 0
    %410 = vmatprep.subr.bf16.mxu0 0
    %411 = vmatpush1.bf16.msra.mxu0 0
    %412 = vmatprep.subr.bf16.mxu0 0
    %413 = vmatpush1.bf16.msra.mxu0 0
    %414 = vmatprep.subr.bf16.mxu0 0
    %415 = vmatpush1.bf16.msra.mxu0 %v399
    %416 = vmatprep.subr.bf16.mxu0 0
    %417 = vmatpush1.bf16.msra.mxu0 %v398
    %418 = vmatprep.subr.bf16.mxu0 0
    %419 = vmatpush2.bf16.msra.mxu0 0
    %420 = vmatprep.subr.bf16.mxu0 0
    %421 = vmatpush2.bf16.msra.mxu0 0
    %422 = vmatprep.subr.bf16.mxu0 0
    %423 = vmatpush2.bf16.msra.mxu0 0
    %424 = vmatprep.subr.bf16.mxu0 0
    %425 = vmatpush2.bf16.msra.mxu0 0
    %426 = vmatprep.subr.bf16.mxu0 0
    %427 = vmatpush2.bf16.msra.mxu0 0
    %428 = vmatprep.subr.bf16.mxu0 0
    %429 = vmatpush2.bf16.msra.mxu0 0
    %430 = vmatprep.subr.bf16.mxu0 0
    %431 = vmatpush2.bf16.msra.mxu0 0
    %432 = vmatprep.subr.bf16.mxu0 0
    %433 = vmatpush2.bf16.msra.mxu0 0
    %434 = vmatprep.mubr.bf16.mxu0 0
    %435 = vmatmul.mubr.bf16.gmra.mxu0 %v308
    %v436 = vpop.f32.mrf.mxu0
    %v437 = vadd.f32 %v388, %v436
    %v438 = vpop.f32.mrf.mxu0
    %v439 = vpop.f32.mrf.mxu0
    %v440 = vadd.f32 %v388, %v439
    %v441 = vpop.f32.mrf.mxu0
    %442 = vmatprep.mubr.bf16.mxu0 0
    %443 = vmatmul.mubr.bf16.gmra.mxu0 %v311
    %v444 = vpop.f32.mrf.mxu0
    %v445 = vadd.f32 %v388, %v444
    %v446 = vpop.f32.mrf.mxu0
    %v447 = vpop.f32.mrf.mxu0
    %v448 = vadd.f32 %v388, %v447
    %v449 = vpop.f32.mrf.mxu0
    %450 = vmatprep.mubr.bf16.mxu0 0
    %451 = vmatmul.mubr.bf16.gmra.mxu0 %v314
    %v452 = vpop.f32.mrf.mxu0
    %v453 = vadd.f32 %v388, %v452
    %v454 = vpop.f32.mrf.mxu0
    %v455 = vpop.f32.mrf.mxu0
    %v456 = vadd.f32 %v388, %v455
    %v457 = vpop.f32.mrf.mxu0
    %458 = vdwg.mxu0
    %v459 = vmax.f32 %v437, 0.0
    %v460 = vmax.f32 %v440, 0.0
    %v461 = vmax.f32 %v445, 0.0
    %v462 = vmax.f32 %v448, 0.0
    %v463 = vmax.f32 %v453, 0.0
    %v464 = vmax.f32 %v456, 0.0
    %v465 = vpack.c.bf16 %v460, %v459
    %v466 = vpack.c.bf16 %v462, %v461
    %v467 = vpack.c.bf16 %v464, %v463
    %v468 = vld [vmem:[%s8] sm:$0xf]
    %v469 = vld [vmem:[%s8 + $0x4] sm:$0xf]
    %v470 = vld [vmem:[%s8 + $0x8] sm:$0xf]
    %v471 = vld [vmem:[%s8 + $0xc] sm:$0xf]
    %v472 = vld [vmem:[%s8 + $0x10] sm:$0xf]
    %v473 = vld [vmem:[%s8 + $0x14] sm:$0xf]
    %v474 = vld [vmem:[%s8 + $0x18] sm:$0xf]
    %v475 = vld [vmem:[%s8 + $0x1c] sm:$0xf]
    %v476 = vld [vmem:[%s9] sm:$0x1]
    %v478 = vlaneseq
    %v479 = vshrl.u32 %v478, 7
    %v480 = vsub.s32 0, %v479
    %v481 = vrot.slane %v476, %v480
    %v491 = vunpack.c.l.b16 %v468
    %v492 = vunpack.c.l.b16 %v469
    %v493 = vunpack.c.l.b16 %v470
    %v494 = vunpack.c.l.b16 %v471
    %v495 = vunpack.c.l.b16 %v472
    %v496 = vunpack.c.l.b16 %v473
    %v497 = vunpack.c.l.b16 %v474
    %v498 = vunpack.c.l.b16 %v475
    %v499 = vpack.c.b16 %v492, %v491
    %v500 = vpack.c.b16 %v494, %v493
    %v501 = vpack.c.b16 %v496, %v495
    %v502 = vpack.c.b16 %v498, %v497
    %vm507 = vcmask 523264
    %v509 = vsel %vm507, %v465, 0
    %v512 = vsel %vm507, %v466, 0
    %v515 = vsel %vm507, %v467, 0
    %517 = vmatprep.subr.bf16.mxu0 0
    %518 = vmatpush1.bf16.msra.mxu0 0
    %519 = vmatprep.subr.bf16.mxu0 0
    %520 = vmatpush1.bf16.msra.mxu0 0
    %521 = vmatprep.subr.bf16.mxu0 0
    %522 = vmatpush1.bf16.msra.mxu0 0
    %523 = vmatprep.subr.bf16.mxu0 0
    %524 = vmatpush1.bf16.msra.mxu0 0
    %525 = vmatprep.subr.bf16.mxu0 0
    %526 = vmatpush1.bf16.msra.mxu0 %v502
    %527 = vmatprep.subr.bf16.mxu0 0
    %528 = vmatpush1.bf16.msra.mxu0 %v501
    %529 = vmatprep.subr.bf16.mxu0 0
    %530 = vmatpush1.bf16.msra.mxu0 %v500
    %531 = vmatprep.subr.bf16.mxu0 0
    %532 = vmatpush1.bf16.msra.mxu0 %v499
    %533 = vmatprep.subr.bf16.mxu0 0
    %534 = vmatpush2.bf16.msra.mxu0 0
    %535 = vmatprep.subr.bf16.mxu0 0
    %536 = vmatpush2.bf16.msra.mxu0 0
    %537 = vmatprep.subr.bf16.mxu0 0
    %538 = vmatpush2.bf16.msra.mxu0 0
    %539 = vmatprep.subr.bf16.mxu0 0
    %540 = vmatpush2.bf16.msra.mxu0 0
    %541 = vmatprep.subr.bf16.mxu0 0
    %542 = vmatpush2.bf16.msra.mxu0 0
    %543 = vmatprep.subr.bf16.mxu0 0
    %544 = vmatpush2.bf16.msra.mxu0 0
    %545 = vmatprep.subr.bf16.mxu0 0
    %546 = vmatpush2.bf16.msra.mxu0 0
    %547 = vmatprep.subr.bf16.mxu0 0
    %548 = vmatpush2.bf16.msra.mxu0 0
    %549 = vmatprep.mubr.bf16.mxu0 0
    %550 = vmatmul.mubr.bf16.gmra.mxu0 %v509
    %v551 = vpop.f32.mrf.mxu0
    %v552 = vadd.f32 %v481, %v551
    %v553 = vpop.f32.mrf.mxu0
    %v554 = vpop.f32.mrf.mxu0
    %v555 = vadd.f32 %v481, %v554
    %v556 = vpop.f32.mrf.mxu0
    %557 = vmatprep.mubr.bf16.mxu0 0
    %558 = vmatmul.mubr.bf16.gmra.mxu0 %v512
    %v559 = vpop.f32.mrf.mxu0
    %v560 = vadd.f32 %v481, %v559
    %v561 = vpop.f32.mrf.mxu0
    %v562 = vpop.f32.mrf.mxu0
    %v563 = vadd.f32 %v481, %v562
    %v564 = vpop.f32.mrf.mxu0
    %565 = vmatprep.mubr.bf16.mxu0 0
    %566 = vmatmul.mubr.bf16.gmra.mxu0 %v515
    %v567 = vpop.f32.mrf.mxu0
    %v568 = vadd.f32 %v481, %v567
    %v569 = vpop.f32.mrf.mxu0
    %v570 = vpop.f32.mrf.mxu0
    %v571 = vadd.f32 %v481, %v570
    %v572 = vpop.f32.mrf.mxu0
    %573 = vdwg.mxu0
    %v574 = vmax.f32 %v552, 0.0
    %v575 = vmax.f32 %v555, 0.0
    %v576 = vmax.f32 %v560, 0.0
    %v577 = vmax.f32 %v563, 0.0
    %v578 = vmax.f32 %v568, 0.0
    %v579 = vmax.f32 %v571, 0.0
    %v580 = vpack.c.bf16 %v575, %v574
    %v581 = vpack.c.bf16 %v577, %v576
    %v582 = vpack.c.bf16 %v579, %v578
    %v583 = vld [vmem:[%s10] sm:$0xf]
    %v584 = vld [vmem:[%s10 + $0x4] sm:$0xf]
    %v585 = vld [vmem:[%s10 + $0x8] sm:$0xf]
    %v586 = vld [vmem:[%s10 + $0xc] sm:$0xf]
    %v587 = vld [vmem:[%s10 + $0x10] sm:$0xf]
    %v588 = vld [vmem:[%s10 + $0x14] sm:$0xf]
    %v589 = vld [vmem:[%s10 + $0x18] sm:$0xf]
    %v590 = vld [vmem:[%s10 + $0x1c] sm:$0xf]
    %v591 = vld [vmem:[%s11] sm:$0x1]
    %v593 = vlaneseq
    %v594 = vshrl.u32 %v593, 7
    %v595 = vsub.s32 0, %v594
    %v596 = vrot.slane %v591, %v595
    %v606 = vunpack.c.l.b16 %v583
    %v607 = vunpack.c.l.b16 %v584
    %v608 = vunpack.c.l.b16 %v585
    %v609 = vunpack.c.l.b16 %v586
    %v610 = vunpack.c.l.b16 %v587
    %v611 = vunpack.c.l.b16 %v588
    %v612 = vunpack.c.l.b16 %v589
    %v613 = vunpack.c.l.b16 %v590
    %v614 = vpack.c.b16 %v607, %v606
    %v615 = vpack.c.b16 %v609, %v608
    %v616 = vpack.c.b16 %v611, %v610
    %v617 = vpack.c.b16 %v613, %v612
    %v623 = vsel %vm507, %v580, 0
    %v626 = vsel %vm507, %v581, 0
    %v629 = vsel %vm507, %v582, 0
    %631 = vmatprep.subr.bf16.mxu0 0
    %632 = vmatpush1.bf16.msra.mxu0 0
    %633 = vmatprep.subr.bf16.mxu0 0
    %634 = vmatpush1.bf16.msra.mxu0 0
    %635 = vmatprep.subr.bf16.mxu0 0
    %636 = vmatpush1.bf16.msra.mxu0 0
    %637 = vmatprep.subr.bf16.mxu0 0
    %638 = vmatpush1.bf16.msra.mxu0 0
    %639 = vmatprep.subr.bf16.mxu0 0
    %640 = vmatpush1.bf16.msra.mxu0 %v617
    %641 = vmatprep.subr.bf16.mxu0 0
    %642 = vmatpush1.bf16.msra.mxu0 %v616
    %643 = vmatprep.subr.bf16.mxu0 0
    %644 = vmatpush1.bf16.msra.mxu0 %v615
    %645 = vmatprep.subr.bf16.mxu0 0
    %646 = vmatpush1.bf16.msra.mxu0 %v614
    %647 = vmatprep.subr.bf16.mxu0 0
    %648 = vmatpush2.bf16.msra.mxu0 0
    %649 = vmatprep.subr.bf16.mxu0 0
    %650 = vmatpush2.bf16.msra.mxu0 0
    %651 = vmatprep.subr.bf16.mxu0 0
    %652 = vmatpush2.bf16.msra.mxu0 0
    %653 = vmatprep.subr.bf16.mxu0 0
    %654 = vmatpush2.bf16.msra.mxu0 0
    %655 = vmatprep.subr.bf16.mxu0 0
    %656 = vmatpush2.bf16.msra.mxu0 0
    %657 = vmatprep.subr.bf16.mxu0 0
    %658 = vmatpush2.bf16.msra.mxu0 0
    %659 = vmatprep.subr.bf16.mxu0 0
    %660 = vmatpush2.bf16.msra.mxu0 0
    %661 = vmatprep.subr.bf16.mxu0 0
    %662 = vmatpush2.bf16.msra.mxu0 0
    %663 = vmatprep.mubr.bf16.mxu0 0
    %664 = vmatmul.mubr.bf16.gmra.mxu0 %v623
    %v665 = vpop.f32.mrf.mxu0
    %v666 = vadd.f32 %v596, %v665
    %v667 = vpop.f32.mrf.mxu0
    %v668 = vpop.f32.mrf.mxu0
    %v669 = vadd.f32 %v596, %v668
    %v670 = vpop.f32.mrf.mxu0
    %671 = vmatprep.mubr.bf16.mxu0 0
    %672 = vmatmul.mubr.bf16.gmra.mxu0 %v626
    %v673 = vpop.f32.mrf.mxu0
    %v674 = vadd.f32 %v596, %v673
    %v675 = vpop.f32.mrf.mxu0
    %v676 = vpop.f32.mrf.mxu0
    %v677 = vadd.f32 %v596, %v676
    %v678 = vpop.f32.mrf.mxu0
    %679 = vmatprep.mubr.bf16.mxu0 0
    %680 = vmatmul.mubr.bf16.gmra.mxu0 %v629
    %v681 = vpop.f32.mrf.mxu0
    %v682 = vadd.f32 %v596, %v681
    %v683 = vpop.f32.mrf.mxu0
    %v684 = vpop.f32.mrf.mxu0
    %v685 = vadd.f32 %v596, %v684
    %v686 = vpop.f32.mrf.mxu0
    %687 = vdwg.mxu0
    %v688 = vxor.u32 %v666, 2147483648
    %v689 = vxor.u32 %v669, 2147483648
    %v690 = vxor.u32 %v674, 2147483648
    %v691 = vxor.u32 %v677, 2147483648
    %v692 = vxor.u32 %v682, 2147483648
    %v693 = vxor.u32 %v685, 2147483648
    %v694 = vmul.f32 %v688, 1.442695
    %v695 = vpow.pop %v694
    %v696 = vmul.f32 %v689, 1.442695
    %v697 = vpow.pop %v696
    %v698 = vmul.f32 %v690, 1.442695
    %v699 = vpow.pop %v698
    %v700 = vmul.f32 %v691, 1.442695
    %v701 = vpow.pop %v700
    %v702 = vmul.f32 %v692, 1.442695
    %v703 = vpow.pop %v702
    %v704 = vmul.f32 %v693, 1.442695
    %v705 = vpow.pop %v704
    %v706 = vadd.f32 %v695, 1.0
    %v707 = vadd.f32 %v697, 1.0
    %v708 = vadd.f32 %v699, 1.0
    %v709 = vadd.f32 %v701, 1.0
    %v710 = vadd.f32 %v703, 1.0
    %v711 = vadd.f32 %v705, 1.0
    %v712 = vrcp.pop %v706
    %v713 = vmul.f32 1.0, %v712
    %v714 = vrcp.pop %v707
    %v715 = vmul.f32 1.0, %v714
    %v716 = vrcp.pop %v708
    %v717 = vmul.f32 1.0, %v716
    %v718 = vrcp.pop %v709
    %v719 = vmul.f32 1.0, %v718
    %v720 = vrcp.pop %v710
    %v721 = vmul.f32 1.0, %v720
    %v722 = vrcp.pop %v711
    %v723 = vmul.f32 1.0, %v722
    %724 = vst [vmem:[%s17] sm:$0xff] %v713
    %725 = vst [vmem:[%s17 + $0x8] sm:$0xff] %v715
    %726 = vst [vmem:[%s17 + $0x10] sm:$0xff] %v717
    %727 = vst [vmem:[%s17 + $0x18] sm:$0xff] %v719
    %728 = vst [vmem:[%s17 + $0x20] sm:$0xff] %v721
    %729 = vst [vmem:[%s17 + $0x28] sm:$0xff] %v723
    %v730 = vld [vmem:[%s12] sm:$0xf]
    %v731 = vld [vmem:[%s12 + $0x4] sm:$0xf]
    %v732 = vld [vmem:[%s12 + $0x8] sm:$0xf]
    %v733 = vld [vmem:[%s12 + $0xc] sm:$0xf]
    %v734 = vld [vmem:[%s12 + $0x10] sm:$0xf]
    %v735 = vld [vmem:[%s12 + $0x14] sm:$0xf]
    %v736 = vld [vmem:[%s13] sm:$0xf]
    %v737 = vld [vmem:[%s13 + $0x4] sm:$0xf]
    %v738 = vld [vmem:[%s13 + $0x8] sm:$0xf]
    %v739 = vld [vmem:[%s13 + $0xc] sm:$0xf]
    %v740 = vld [vmem:[%s14] sm:$0x1]
    %v742 = vlaneseq
    %v743 = vshrl.u32 %v742, 7
    %v744 = vsub.s32 0, %v743
    %v745 = vrot.slane %v740, %v744
    %v753 = vunpack.c.l.b16 %v730
    %v754 = vunpack.c.l.b16 %v731
    %v755 = vunpack.c.l.b16 %v732
    %v756 = vunpack.c.l.b16 %v733
    %v757 = vunpack.c.l.b16 %v734
    %v758 = vunpack.c.l.b16 %v735
    %v759 = vpack.c.b16 %v754, %v753
    %v760 = vpack.c.b16 %v756, %v755
    %v761 = vpack.c.b16 %v758, %v757
    %v766 = vunpack.c.l.b16 %v736
    %v767 = vunpack.c.l.b16 %v737
    %v768 = vunpack.c.l.b16 %v738
    %v769 = vunpack.c.l.b16 %v739
    %v770 = vpack.c.b16 %v767, %v766
    %v771 = vpack.c.b16 %v769, %v768
    %v775 = vsel %vm306, %v759, 0
    %v778 = vsel %vm306, %v760, 0
    %v781 = vsel %vm306, %v761, 0
    %783 = vmatprep.subr.bf16.mxu0 0
    %784 = vmatpush1.bf16.msra.mxu0 0
    %785 = vmatprep.subr.bf16.mxu0 0
    %786 = vmatpush1.bf16.msra.mxu0 0
    %787 = vmatprep.subr.bf16.mxu0 0
    %788 = vmatpush1.bf16.msra.mxu0 0
    %789 = vmatprep.subr.bf16.mxu0 0
    %790 = vmatpush1.bf16.msra.mxu0 0
    %791 = vmatprep.subr.bf16.mxu0 0
    %792 = vmatpush1.bf16.msra.mxu0 0
    %793 = vmatprep.subr.bf16.mxu0 0
    %794 = vmatpush1.bf16.msra.mxu0 0
    %795 = vmatprep.subr.bf16.mxu0 0
    %796 = vmatpush1.bf16.msra.mxu0 %v771
    %797 = vmatprep.subr.bf16.mxu0 0
    %798 = vmatpush1.bf16.msra.mxu0 %v770
    %799 = vmatprep.subr.bf16.mxu0 0
    %800 = vmatpush2.bf16.msra.mxu0 0
    %801 = vmatprep.subr.bf16.mxu0 0
    %802 = vmatpush2.bf16.msra.mxu0 0
    %803 = vmatprep.subr.bf16.mxu0 0
    %804 = vmatpush2.bf16.msra.mxu0 0
    %805 = vmatprep.subr.bf16.mxu0 0
    %806 = vmatpush2.bf16.msra.mxu0 0
    %807 = vmatprep.subr.bf16.mxu0 0
    %808 = vmatpush2.bf16.msra.mxu0 0
    %809 = vmatprep.subr.bf16.mxu0 0
    %810 = vmatpush2.bf16.msra.mxu0 0
    %811 = vmatprep.subr.bf16.mxu0 0
    %812 = vmatpush2.bf16.msra.mxu0 0
    %813 = vmatprep.subr.bf16.mxu0 0
    %814 = vmatpush2.bf16.msra.mxu0 0
    %815 = vmatprep.mubr.bf16.mxu0 0
    %816 = vmatmul.mubr.bf16.gmra.mxu0 %v775
    %v817 = vpop.f32.mrf.mxu0
    %v818 = vadd.f32 %v745, %v817
    %v819 = vpop.f32.mrf.mxu0
    %v820 = vpop.f32.mrf.mxu0
    %v821 = vadd.f32 %v745, %v820
    %v822 = vpop.f32.mrf.mxu0
    %823 = vmatprep.mubr.bf16.mxu0 0
    %824 = vmatmul.mubr.bf16.gmra.mxu0 %v778
    %v825 = vpop.f32.mrf.mxu0
    %v826 = vadd.f32 %v745, %v825
    %v827 = vpop.f32.mrf.mxu0
    %v828 = vpop.f32.mrf.mxu0
    %v829 = vadd.f32 %v745, %v828
    %v830 = vpop.f32.mrf.mxu0
    %831 = vmatprep.mubr.bf16.mxu0 0
    %832 = vmatmul.mubr.bf16.gmra.mxu0 %v781
    %v833 = vpop.f32.mrf.mxu0
    %v834 = vadd.f32 %v745, %v833
    %v835 = vpop.f32.mrf.mxu0
    %v836 = vpop.f32.mrf.mxu0
    %v837 = vadd.f32 %v745, %v836
    %v838 = vpop.f32.mrf.mxu0
    %839 = vdwg.mxu0
    %840 = vst [vmem:[%s18] sm:$0xff] %v818
    %841 = vst [vmem:[%s18 + $0x8] sm:$0xff] %v821
    %842 = vst [vmem:[%s18 + $0x10] sm:$0xff] %v826
    %843 = vst [vmem:[%s18 + $0x18] sm:$0xff] %v829
    %844 = vst [vmem:[%s18 + $0x20] sm:$0xff] %v834
    %845 = vst [vmem:[%s18 + $0x28] sm:$0xff] %v837
    // Predicated region
    $region62: #{cdndsgg_forward.1} parent=1 // pred_check
      _
    $region63: #{cdndsgg_forward.1} parent=1 // pred_check_branch
      %847 = sbr.rel (0) target = $region65
    $region64: #{cdndsgg_forward.1} parent=1 // pred_region
      %s849 = ssub.s32 2048, 2048
      %850 = vsyncadd [#allocation3], %s849
      %s851 = sshll.u32 [#allocation2], 4
      %s852 = int_to_ptr.vmem [resolvable:$true] %s851
      %857 = dma.vmem_to_hbm [thread:$0]  %s852, 2048, %s15, [#allocation3], 128, 128, 8
    $region65: #{cdndsgg_forward.1} parent=1 // pred_fallthru
      _
    // Predicated region
    $region66: #{cdndsgg_forward.1} parent=1 // pred_check
      _
    $region67: #{cdndsgg_forward.1} parent=1 // pred_check_branch
      %859 = sbr.rel (0) target = $region69
    $region68: #{cdndsgg_forward.1} parent=1 // pred_region
      _
    $region69: #{cdndsgg_forward.1} parent=1 // pred_fallthru
      _
    // Predicated region
    $region70: #{cdndsgg_forward.1} parent=1 // pred_check
      _
    $region71: #{cdndsgg_forward.1} parent=1 // pred_check_branch
      %861 = sbr.rel (0) target = $region73
    $region72: #{cdndsgg_forward.1} parent=1 // pred_region
      _
    $region73: #{cdndsgg_forward.1} parent=1 // pred_fallthru
      _
    // Predicated region
    $region74: #{cdndsgg_forward.1} parent=1 // pred_check
      _
    $region75: #{cdndsgg_forward.1} parent=1 // pred_check_branch
      %863 = sbr.rel (0) target = $region77
    $region76: #{cdndsgg_forward.1} parent=1 // pred_region
      _
    $region77: #{cdndsgg_forward.1} parent=1 // pred_fallthru
      _
    // Predicated region
    $region78: #{cdndsgg_forward.1} parent=1 // pred_check
      _
    $region79: #{cdndsgg_forward.1} parent=1 // pred_check_branch
      %865 = sbr.rel (0) target = $region81
    $region80: #{cdndsgg_forward.1} parent=1 // pred_region
      %866 = dma.done [#allocation3], 2048
    $region81: #{cdndsgg_forward.1} parent=1 // pred_fallthru
      _
    // Predicated region
    $region82: #{cdndsgg_forward.1} parent=1 // pred_check
      _
    $region83: #{cdndsgg_forward.1} parent=1 // pred_check_branch
      %868 = sbr.rel (0) target = $region85
    $region84: #{cdndsgg_forward.1} parent=1 // pred_region
      _
    $region85: #{cdndsgg_forward.1} parent=1 // pred_fallthru
      _
    // Predicated region
    $region86: #{cdndsgg_forward.1} parent=1 // pred_check
      _
    $region87: #{cdndsgg_forward.1} parent=1 // pred_check_branch
      %870 = sbr.rel (0) target = $region89
    $region88: #{cdndsgg_forward.1} parent=1 // pred_region
      _
    $region89: #{cdndsgg_forward.1} parent=1 // pred_fallthru
      _
    // Predicated region
    $region90: #{cdndsgg_forward.1} parent=1 // pred_check
      _
    $region91: #{cdndsgg_forward.1} parent=1 // pred_check_branch
      %872 = sbr.rel (0) target = $region93
    $region92: #{cdndsgg_forward.1} parent=1 // pred_region
      _
    $region93: #{cdndsgg_forward.1} parent=1 // pred_fallthru
      _
    %873 = vsyncpa [#allocation3], 1

</llo_original>
